<compile_context>
chip_gen: v6e
topology: v6e:2x2x1
jax: 0.10.0
libtpu: 0.0.40
codegen_flags: <defaults>
</compile_context>

<pallas_src>
import jax
import jax.numpy as jnp
from jax.experimental import pallas as pl
from jax.experimental.pallas import tpu as pltpu


_BN_EPS = 1e-5


# ---------------------------------------------------------------------------
# Shared body:  bn0 -> fcs1 -> ReLU -> fc2(split concat) -> ReLU -> fc5 head
# ---------------------------------------------------------------------------
def _critic_body(state_ref, action_ref, w1_ref, b1_ref, w2s_ref, w2a_ref,
                 b2_ref, w5_ref, b5_val, out_ref):
    # --- bn0: one-pass batch statistics (biased var, gamma=1, beta=0) ---
    s = state_ref[...].astype(jnp.float32)                        # (B, S)
    mean = jnp.mean(s, axis=0, keepdims=True)                     # (1, S)
    mean_sq = jnp.mean(s * s, axis=0, keepdims=True)              # (1, S)
    var = jnp.maximum(mean_sq - mean * mean, 0.0)                 # biased var
    s_bn = (s - mean) * jax.lax.rsqrt(var + jnp.float32(_BN_EPS))

    mxu_dtype = w1_ref.dtype  # bf16 by default (f32 accumulation below)

    # --- fcs1 + ReLU (MXU, f32 accumulation) ---
    xs = jnp.dot(s_bn.astype(mxu_dtype), w1_ref[...],
                 preferred_element_type=jnp.float32)
    xs = jnp.maximum(xs + b1_ref[...].astype(jnp.float32), 0.0)   # (B, H1)

    # --- fc2 on concat(xs, action): split matmul (no in-kernel concat) ---
    a = action_ref[...].astype(mxu_dtype)                         # (B, A)
    x = (jnp.dot(xs.astype(mxu_dtype), w2s_ref[...],
                 preferred_element_type=jnp.float32)
         + jnp.dot(a, w2a_ref[...], preferred_element_type=jnp.float32)
         + b2_ref[...].astype(jnp.float32))
    x = jnp.maximum(x, 0.0)                                       # (B, H2)

    # --- fc5 scalar head: VPU multiply + lane reduce (no N=1 MXU matmul) ---
    w5_row = w5_ref[...].astype(jnp.float32)                      # (1, H2)
    out = jnp.sum(x * w5_row, axis=-1, keepdims=True) + b5_val    # (B, 1)
    out_ref[...] = out.astype(out_ref.dtype)


# Single weight set, single grid point (whole minibatch resident in VMEM).
def critic_kernel(state_ref, action_ref, w1_ref, b1_ref, w2s_ref, w2a_ref,
                  b2_ref, w5_ref, b5_ref, out_ref):
    _critic_body(state_ref, action_ref, w1_ref, b1_ref, w2s_ref, w2a_ref,
                 b2_ref, w5_ref, b5_ref[0], out_ref)


# Multiple weight sets (online/target critics): grid axis over weight sets,
# same (state, action) minibatch; BN stats are recomputed per set (state is
# ~8 KB, the redundant reduce is free vs. any extra launch).
def critic_kernel_multi(state_ref, action_ref, w1_ref, b1_ref, w2s_ref,
                        w2a_ref, b2_ref, w5_ref, b5_ref, out_ref):
    w = pl.program_id(0)
    _critic_body(state_ref, action_ref, w1_ref, b1_ref, w2s_ref, w2a_ref,
                 b2_ref, w5_ref, b5_ref[w], out_ref)


# ---------------------------------------------------------------------------
# Wrappers
# ---------------------------------------------------------------------------
def cast_for_mxu(params, dtype):
    """Cast the MXU matmul weights (w1, w2s, w2a) to `dtype` (default bf16).

    Note: the kernel also casts the activations feeding the MXU to `dtype`,
    so this is a bf16 x bf16 (f32-accumulate) path, not weights-only quant.
    Biases, the fc5 head and all BN math stay in f32.
    """
    (w1, b1, w2s, w2a, b2, w5_row, b5) = params
    return (w1.astype(dtype), b1, w2s.astype(dtype), w2a.astype(dtype),
            b2, w5_row, b5)


def critic_forward(state, action, params, *, mxu_dtype=jnp.bfloat16):
    """Critic forward: ONE pallas_call, whole minibatch, BN stats in-kernel.

    This is the only per-batch path: at these sizes any batch tiling / XLA
    BN prolog is pure overhead (the kernel is launch/latency bound).
    """
    B = state.shape[0]
    w1, b1, w2s, w2a, b2, w5_row, b5 = cast_for_mxu(params, mxu_dtype)

    vmem = pl.BlockSpec(memory_space=pltpu.MemorySpace.VMEM)
    smem = pl.BlockSpec(memory_space=pltpu.MemorySpace.SMEM)
    return pl.pallas_call(
        critic_kernel,
        out_shape=jax.ShapeDtypeStruct((B, 1), jnp.float32),
        in_specs=[vmem, vmem,                      # state, action
                  vmem, vmem, vmem, vmem, vmem,    # w1, b1, w2s, w2a, b2
                  vmem, smem],                     # w5_row, b5 (1-D SMEM)
        out_specs=vmem,
    )(state, action, w1, b1, w2s, w2a, b2, w5_row, b5)


def critic_forward_multi(state, action, params_list, *,
                         mxu_dtype=jnp.bfloat16):
    """Evaluate several independent critics (e.g. online + target) on the same
    (state, action) minibatch in a single pallas_call: the grid axis runs over
    weight sets, amortizing launch + pipeline overhead.  Returns (W, B, 1)."""
    B, S = state.shape
    A = action.shape[1]

    stacked = [jnp.stack(t)
               for t in zip(*(cast_for_mxu(p, mxu_dtype) for p in params_list))]
    w1, b1, w2s, w2a, b2, w5_row, b5 = stacked
    b5 = b5.reshape(-1)                                  # (W,) 1-D SMEM table
    W = w1.shape[0]
    H1 = w1.shape[-1]
    H2 = w2s.shape[-1]

    def shared(shape):       # same block every grid step (state / action)
        return pl.BlockSpec(shape, lambda w: (0, 0))

    def per_set(shape):      # one weight set per grid step (leading dim squeezed)
        return pl.BlockSpec((None,) + shape, lambda w: (w, 0, 0))

    return pl.pallas_call(
        critic_kernel_multi,
        out_shape=jax.ShapeDtypeStruct((W, B, 1), jnp.float32),
        grid_spec=pltpu.PrefetchScalarGridSpec(
            num_scalar_prefetch=0,
            grid=(W,),
            in_specs=[shared((B, S)), shared((B, A)),
                      per_set((S, H1)), per_set((1, H1)),
                      per_set((H1, H2)), per_set((A, H2)), per_set((1, H2)),
                      per_set((1, H2)),
                      pl.BlockSpec(memory_space=pltpu.MemorySpace.SMEM)],
            out_specs=pl.BlockSpec((None, B, 1), lambda w: (w, 0, 0)),
        ),
        compiler_params=pltpu.CompilerParams(
            dimension_semantics=("parallel",)),   # 2-TC split on v7x; loop on v5e/v6e
    )(state, action, w1, b1, w2s, w2a, b2, w5_row, b5)


# ---------------------------------------------------------------------------
# Parameters / reference
# ---------------------------------------------------------------------------
def init_params(key, state_size, action_size, h1=128, h2=128):
    ks = jax.random.split(key, 6)
    # DDPG-style uniform init (ranges mirror reset_parameters; exact random
    # values differ from torch.manual_seed).
    lim1 = 1.0 / jnp.sqrt(jnp.float32(h1))
    lim2 = 1.0 / jnp.sqrt(jnp.float32(h2))
    w1 = jax.random.uniform(ks[0], (state_size, h1), jnp.float32, -lim1, lim1)
    b1 = jax.random.uniform(ks[1], (1, h1), jnp.float32, -lim1, lim1)
    w2_full = jax.random.uniform(ks[2], (h1 + action_size, h2), jnp.float32,
                                 -lim2, lim2)
    w2s, w2a = w2_full[:h1], w2_full[h1:]
    b2 = jax.random.uniform(ks[3], (1, h2), jnp.float32, -lim2, lim2)
    w5_row = jax.random.uniform(ks[4], (1, h2), jnp.float32, -0.003, 0.003)
    b5 = jax.random.uniform(ks[5], (1,), jnp.float32, -0.003, 0.003)
    return (w1, b1, w2s, w2a, b2, w5_row, b5)


def _reference(state, action, params):
    """Pure-JAX f32 reference for correctness checks."""
    (w1, b1, w2s, w2a, b2, w5_row, b5) = params
    mean = jnp.mean(state, axis=0, keepdims=True)
    var = jnp.mean((state - mean) ** 2, axis=0, keepdims=True)
    s_bn = (state - mean) / jnp.sqrt(var + _BN_EPS)
    xs = jnp.maximum(s_bn @ w1 + b1, 0.0)
    x = jnp.maximum(xs @ w2s + action @ w2a + b2, 0.0)
    return x @ w5_row.T + b5


if __name__ == "__main__":
    # A full DDPG minibatch through a single pallas_call.
    B, state_size, action_size = 64, 33, 4

    key = jax.random.PRNGKey(0)
    k_state, k_action, k_p1, k_p2 = jax.random.split(key, 4)
    state = jax.random.normal(k_state, (B, state_size), jnp.float32)
    action = jax.random.normal(k_action, (B, action_size), jnp.float32)
    params = init_params(k_p1, state_size, action_size)
    params_tgt = init_params(k_p2, state_size, action_size)

    ref = _reference(state, action, params)
    ref_tgt = _reference(state, action, params_tgt)

    # 1) Default path: bf16 MXU operands (all generations), f32 accumulation,
    #    single grid point, BN stats computed in-kernel.
    out = critic_forward(state, action, params)
    jax.block_until_ready(out)
    assert out.shape == (B, 1)
    assert jnp.allclose(out, ref, atol=5e-2, rtol=5e-2)

    # 2) Exact f32-operand variant for a tight numerical check.
    out_f32 = critic_forward(state, action, params, mxu_dtype=jnp.float32)
    jax.block_until_ready(out_f32)
    assert jnp.allclose(out_f32, ref, atol=1e-4, rtol=1e-4)

    # 3) Amortized launch: online + target critic in ONE pallas_call
    #    (grid over weight sets; 2-TC "parallel" split on v7x).
    out_multi = critic_forward_multi(state, action, [params, params_tgt])
    jax.block_until_ready(out_multi)
    assert out_multi.shape == (2, B, 1)
    assert jnp.allclose(out_multi[0], ref, atol=5e-2, rtol=5e-2)
    assert jnp.allclose(out_multi[1], ref_tgt, atol=5e-2, rtol=5e-2)

    print("KERNEL_OK")
</pallas_src>

<mosaic_0001>
module attributes {stable_mosaic.version = 11 : i64} {
  func.func @critic_kernel(%arg0: memref<64x33xf32, #tpu.memory_space<vmem>>, %arg1: memref<64x4xf32, #tpu.memory_space<vmem>>, %arg2: memref<33x128xbf16, #tpu.memory_space<vmem>>, %arg3: memref<1x128xf32, #tpu.memory_space<vmem>>, %arg4: memref<128x128xbf16, #tpu.memory_space<vmem>>, %arg5: memref<4x128xbf16, #tpu.memory_space<vmem>>, %arg6: memref<1x128xf32, #tpu.memory_space<vmem>>, %arg7: memref<1x128xf32, #tpu.memory_space<vmem>>, %arg8: memref<1xf32, #tpu.memory_space<smem>>, %arg9: memref<64x1xf32, #tpu.memory_space<vmem>>) attributes {dimension_semantics = [], scalar_prefetch = 0 : i64, scratch_operands = 0 : i64, tpu.core_type = #tpu.core_type<tc>} {
    %c0 = arith.constant 0 : index
    %0 = memref.load %arg8[%c0] : memref<1xf32, #tpu.memory_space<smem>>
    %c0_0 = arith.constant 0 : index
    %c0_1 = arith.constant 0 : index
    %1 = vector.load %arg0[%c0_0, %c0_1] : memref<64x33xf32, #tpu.memory_space<vmem>>, vector<64x33xf32>
    %cst = arith.constant dense<0.000000e+00> : vector<33xf32>
    %2 = vector.multi_reduction <add>, %1, %cst [0] : vector<64x33xf32> to vector<33xf32>
    %3 = vector.shape_cast %2 : vector<33xf32> to vector<1x33xf32>
    %cst_2 = arith.constant 6.400000e+01 : f32
    %4 = vector.broadcast %cst_2 : f32 to vector<1x33xf32>
    %5 = arith.divf %3, %4 : vector<1x33xf32>
    %6 = arith.mulf %1, %1 : vector<64x33xf32>
    %cst_3 = arith.constant dense<0.000000e+00> : vector<33xf32>
    %7 = vector.multi_reduction <add>, %6, %cst_3 [0] : vector<64x33xf32> to vector<33xf32>
    %8 = vector.shape_cast %7 : vector<33xf32> to vector<1x33xf32>
    %cst_4 = arith.constant 6.400000e+01 : f32
    %9 = vector.broadcast %cst_4 : f32 to vector<1x33xf32>
    %10 = arith.divf %8, %9 : vector<1x33xf32>
    %11 = arith.mulf %5, %5 : vector<1x33xf32>
    %12 = arith.subf %10, %11 : vector<1x33xf32>
    %cst_5 = arith.constant 0.000000e+00 : f32
    %13 = vector.broadcast %cst_5 : f32 to vector<1x33xf32>
    %14 = arith.maximumf %12, %13 : vector<1x33xf32>
    %15 = vector.broadcast %5 : vector<1x33xf32> to vector<64x33xf32>
    %16 = arith.subf %1, %15 : vector<64x33xf32>
    %cst_6 = arith.constant 9.99999974E-6 : f32
    %17 = vector.broadcast %cst_6 : f32 to vector<1x33xf32>
    %18 = arith.addf %14, %17 : vector<1x33xf32>
    %19 = math.rsqrt %18 : vector<1x33xf32>
    %20 = vector.broadcast %19 : vector<1x33xf32> to vector<64x33xf32>
    %21 = arith.mulf %16, %20 : vector<64x33xf32>
    %22 = arith.truncf %21 : vector<64x33xf32> to vector<64x33xbf16>
    %c0_7 = arith.constant 0 : index
    %c0_8 = arith.constant 0 : index
    %23 = vector.load %arg2[%c0_7, %c0_8] : memref<33x128xbf16, #tpu.memory_space<vmem>>, vector<33x128xbf16>
    %cst_9 = arith.constant dense<0.000000e+00> : vector<64x128xf32>
    %24 = tpu.matmul %22, %23, %cst_9 {dimension_numbers = #tpu.dot_dimension_numbers<[1], [0], [0], [1], [0, 0, 1, 1], [], []>} : vector<64x33xbf16>, vector<33x128xbf16>, vector<64x128xf32> -> vector<64x128xf32>
    %c0_10 = arith.constant 0 : index
    %c0_11 = arith.constant 0 : index
    %25 = vector.load %arg3[%c0_10, %c0_11] : memref<1x128xf32, #tpu.memory_space<vmem>>, vector<1x128xf32>
    %26 = vector.broadcast %25 : vector<1x128xf32> to vector<64x128xf32>
    %27 = arith.addf %24, %26 : vector<64x128xf32>
    %cst_12 = arith.constant 0.000000e+00 : f32
    %28 = vector.broadcast %cst_12 : f32 to vector<64x128xf32>
    %29 = arith.maximumf %27, %28 : vector<64x128xf32>
    %c0_13 = arith.constant 0 : index
    %c0_14 = arith.constant 0 : index
    %30 = vector.load %arg1[%c0_13, %c0_14] : memref<64x4xf32, #tpu.memory_space<vmem>>, vector<64x4xf32>
    %31 = arith.truncf %30 : vector<64x4xf32> to vector<64x4xbf16>
    %32 = arith.truncf %29 : vector<64x128xf32> to vector<64x128xbf16>
    %c0_15 = arith.constant 0 : index
    %c0_16 = arith.constant 0 : index
    %33 = vector.load %arg4[%c0_15, %c0_16] : memref<128x128xbf16, #tpu.memory_space<vmem>>, vector<128x128xbf16>
    %cst_17 = arith.constant dense<0.000000e+00> : vector<64x128xf32>
    %34 = tpu.matmul %32, %33, %cst_17 {dimension_numbers = #tpu.dot_dimension_numbers<[1], [0], [0], [1], [0, 0, 1, 1], [], []>} : vector<64x128xbf16>, vector<128x128xbf16>, vector<64x128xf32> -> vector<64x128xf32>
    %c0_18 = arith.constant 0 : index
    %c0_19 = arith.constant 0 : index
    %35 = vector.load %arg5[%c0_18, %c0_19] : memref<4x128xbf16, #tpu.memory_space<vmem>>, vector<4x128xbf16>
    %cst_20 = arith.constant dense<0.000000e+00> : vector<64x128xf32>
    %36 = tpu.matmul %31, %35, %cst_20 {dimension_numbers = #tpu.dot_dimension_numbers<[1], [0], [0], [1], [0, 0, 1, 1], [], []>} : vector<64x4xbf16>, vector<4x128xbf16>, vector<64x128xf32> -> vector<64x128xf32>
    %37 = arith.addf %34, %36 : vector<64x128xf32>
    %c0_21 = arith.constant 0 : index
    %c0_22 = arith.constant 0 : index
    %38 = vector.load %arg6[%c0_21, %c0_22] : memref<1x128xf32, #tpu.memory_space<vmem>>, vector<1x128xf32>
    %39 = vector.broadcast %38 : vector<1x128xf32> to vector<64x128xf32>
    %40 = arith.addf %37, %39 : vector<64x128xf32>
    %cst_23 = arith.constant 0.000000e+00 : f32
    %41 = vector.broadcast %cst_23 : f32 to vector<64x128xf32>
    %42 = arith.maximumf %40, %41 : vector<64x128xf32>
    %c0_24 = arith.constant 0 : index
    %c0_25 = arith.constant 0 : index
    %43 = vector.load %arg7[%c0_24, %c0_25] : memref<1x128xf32, #tpu.memory_space<vmem>>, vector<1x128xf32>
    %44 = vector.broadcast %43 : vector<1x128xf32> to vector<64x128xf32>
    %45 = arith.mulf %42, %44 : vector<64x128xf32>
    %cst_26 = arith.constant dense<0.000000e+00> : vector<64xf32>
    %46 = vector.multi_reduction <add>, %45, %cst_26 [1] : vector<64x128xf32> to vector<64xf32>
    %47 = vector.shape_cast %46 : vector<64xf32> to vector<64x1xf32>
    %48 = vector.broadcast %0 : f32 to vector<64x1xf32>
    %49 = arith.addf %47, %48 : vector<64x1xf32>
    %c0_27 = arith.constant 0 : index
    %c0_28 = arith.constant 0 : index
    %50 = vector.load %arg9[%c0_27, %c0_28] : memref<64x1xf32, #tpu.memory_space<vmem>>, vector<64x1xf32>
    tpu.vector_store %arg9[%c0_27, %c0_28], %49 {strides = array<i32>} : memref<64x1xf32, #tpu.memory_space<vmem>>, vector<64x1xf32>,
    return
  }
}

</mosaic_0001>

<llo_original>
// kernel: tpu_custom_call.1
$region0: #{tpu_custom_call.1}
  #allocation0 [shape = 'u32[]', space=smem, size = 0x4, offset = 0x4, fixed_abs, tag = 'smem constant byte address 0x4 - core index']
  #allocation1 [shape = 'u32[144,128]{1,0:T(1,128)}', space=vmem, size = 0x12000, scoped, tag = 'internal scratch']
  #allocation2 [shape = 'f32[1]{0:T(128)S(6)}', space=smem, size = 0x200, scoped, tag = 'scoped memory for tpu_custom_call.1']
  %s0 = inlined_call_operand.vmem [shape: f32[64,33], index: 0, kind: input, shape index: {}]
  %s1 = inlined_call_operand.vmem [shape: f32[64,4], index: 1, kind: input, shape index: {}]
  %s2 = inlined_call_operand.vmem [shape: bf16[33,128], index: 2, kind: input, shape index: {}]
  %s3 = inlined_call_operand.vmem [shape: f32[1,128], index: 3, kind: input, shape index: {}]
  %s4 = inlined_call_operand.vmem [shape: bf16[128,128], index: 4, kind: input, shape index: {}]
  %s5 = inlined_call_operand.vmem [shape: bf16[4,128], index: 5, kind: input, shape index: {}]
  %s6 = inlined_call_operand.vmem [shape: f32[1,128], index: 6, kind: input, shape index: {}]
  %s7 = inlined_call_operand.vmem [shape: f32[1,128], index: 7, kind: input, shape index: {}]
  %s8 = inlined_call_operand.<no memory space> [shape: f32[1], index: 8, kind: input, shape index: {}]
  %s9 = inlined_call_operand.vmem [shape: f32[64,1], index: 9, kind: output, shape index: {}]
  %s10 = sld [smem:[#allocation0]]
  $region46: #{tpu_custom_call.1} parent=0
    _
  %s12 = ssub.s32 1, %s10
  %s13 = scalar_select 0, %s12, %s10
  %14 = sst [smem:[#allocation2]] %s8
  // Predicated region
  $region2: #{tpu_custom_call.1} parent=0 // pred_check
    _
  $region3: #{tpu_custom_call.1} parent=0 // pred_check_branch
    %16 = sbr.rel (0) target = $region5
  $region4: #{tpu_custom_call.1} parent=0 // pred_region
    _
  $region5: #{tpu_custom_call.1} parent=0 // pred_fallthru
    _
  // Predicated region
  $region6: #{tpu_custom_call.1} parent=0 // pred_check
    _
  $region7: #{tpu_custom_call.1} parent=0 // pred_check_branch
    %18 = sbr.rel (0) target = $region9
  $region8: #{tpu_custom_call.1} parent=0 // pred_region
    _
  $region9: #{tpu_custom_call.1} parent=0 // pred_fallthru
    _
  // Predicated region
  $region10: #{tpu_custom_call.1} parent=0 // pred_check
    _
  $region11: #{tpu_custom_call.1} parent=0 // pred_check_branch
    %20 = sbr.rel (0) target = $region13
  $region12: #{tpu_custom_call.1} parent=0 // pred_region
    _
  $region13: #{tpu_custom_call.1} parent=0 // pred_fallthru
    _
  // Predicated region
  $region14: #{tpu_custom_call.1} parent=0 // pred_check
    _
  $region15: #{tpu_custom_call.1} parent=0 // pred_check_branch
    %22 = sbr.rel (0) target = $region17
  $region16: #{tpu_custom_call.1} parent=0 // pred_region
    _
  $region17: #{tpu_custom_call.1} parent=0 // pred_fallthru
    _
  // Predicated region
  $region18: #{tpu_custom_call.1} parent=0 // pred_check
    _
  $region19: #{tpu_custom_call.1} parent=0 // pred_check_branch
    %24 = sbr.rel (0) target = $region21
  $region20: #{tpu_custom_call.1} parent=0 // pred_region
    _
  $region21: #{tpu_custom_call.1} parent=0 // pred_fallthru
    _
  // Predicated region
  $region22: #{tpu_custom_call.1} parent=0 // pred_check
    _
  $region23: #{tpu_custom_call.1} parent=0 // pred_check_branch
    %26 = sbr.rel (0) target = $region25
  $region24: #{tpu_custom_call.1} parent=0 // pred_region
    _
  $region25: #{tpu_custom_call.1} parent=0 // pred_fallthru
    _
  // Predicated region
  $region26: #{tpu_custom_call.1} parent=0 // pred_check
    _
  $region27: #{tpu_custom_call.1} parent=0 // pred_check_branch
    %28 = sbr.rel (0) target = $region29
  $region28: #{tpu_custom_call.1} parent=0 // pred_region
    _
  $region29: #{tpu_custom_call.1} parent=0 // pred_fallthru
    _
  // Predicated region
  $region30: #{tpu_custom_call.1} parent=0 // pred_check
    _
  $region31: #{tpu_custom_call.1} parent=0 // pred_check_branch
    %30 = sbr.rel (0) target = $region33
  $region32: #{tpu_custom_call.1} parent=0 // pred_region
    _
  $region33: #{tpu_custom_call.1} parent=0 // pred_fallthru
    _
  // Predicated region
  $region34: #{tpu_custom_call.1} parent=0 // pred_check
    _
  $region35: #{tpu_custom_call.1} parent=0 // pred_check_branch
    %32 = sbr.rel (0) target = $region37
  $region36: #{tpu_custom_call.1} parent=0 // pred_region
    _
  $region37: #{tpu_custom_call.1} parent=0 // pred_fallthru
    _
  %s34 = sld [smem:[#allocation2]]
  %v35 = vld [vmem:[%s0] sm:$0xff]
  %v36 = vld [vmem:[%s0 + $0x8] sm:$0xff]
  %v37 = vld [vmem:[%s0 + $0x10] sm:$0xff]
  %v38 = vld [vmem:[%s0 + $0x18] sm:$0xff]
  %v39 = vld [vmem:[%s0 + $0x20] sm:$0xff]
  %v40 = vld [vmem:[%s0 + $0x28] sm:$0xff]
  %v41 = vld [vmem:[%s0 + $0x30] sm:$0xff]
  %v42 = vld [vmem:[%s0 + $0x38] sm:$0xff]
  %vm43 = vcmask 269312
  %v44 = vsel %vm43, %v35, 0.0
  %v45 = vsel %vm43, %v36, 0.0
  %v46 = vadd.f32 %v44, %v45
  %v47 = vsel %vm43, %v37, 0.0
  %v48 = vadd.f32 %v46, %v47
  %v49 = vsel %vm43, %v38, 0.0
  %v50 = vadd.f32 %v48, %v49
  %v51 = vsel %vm43, %v39, 0.0
  %v52 = vadd.f32 %v50, %v51
  %v53 = vsel %vm43, %v40, 0.0
  %v54 = vadd.f32 %v52, %v53
  %v55 = vsel %vm43, %v41, 0.0
  %v56 = vadd.f32 %v54, %v55
  %v57 = vsel %vm43, %v42, 0.0
  %v58 = vadd.f32 %v56, %v57
  %v59 = vrot.slane %v58, 4
  %v60 = vadd.f32 %v58, %v59
  %v61 = vrot.slane %v60, 2
  %v62 = vadd.f32 %v60, %v61
  %v63 = vrot.slane %v62, 1
  %v64 = vadd.f32 %v62, %v63
  %v65 = vrcp.pop 64.0
  %v66 = vmul.f32 %v64, %v65
  %v67 = vmul.f32 %v35, %v35
  %v68 = vmul.f32 %v36, %v36
  %v69 = vmul.f32 %v37, %v37
  %v70 = vmul.f32 %v38, %v38
  %v71 = vmul.f32 %v39, %v39
  %v72 = vmul.f32 %v40, %v40
  %v73 = vmul.f32 %v41, %v41
  %v74 = vmul.f32 %v42, %v42
  %v75 = vsel %vm43, %v67, 0.0
  %v76 = vsel %vm43, %v68, 0.0
  %v77 = vadd.f32 %v75, %v76
  %v78 = vsel %vm43, %v69, 0.0
  %v79 = vadd.f32 %v77, %v78
  %v80 = vsel %vm43, %v70, 0.0
  %v81 = vadd.f32 %v79, %v80
  %v82 = vsel %vm43, %v71, 0.0
  %v83 = vadd.f32 %v81, %v82
  %v84 = vsel %vm43, %v72, 0.0
  %v85 = vadd.f32 %v83, %v84
  %v86 = vsel %vm43, %v73, 0.0
  %v87 = vadd.f32 %v85, %v86
  %v88 = vsel %vm43, %v74, 0.0
  %v89 = vadd.f32 %v87, %v88
  %v90 = vrot.slane %v89, 4
  %v91 = vadd.f32 %v89, %v90
  %v92 = vrot.slane %v91, 2
  %v93 = vadd.f32 %v91, %v92
  %v94 = vrot.slane %v93, 1
  %v95 = vadd.f32 %v93, %v94
  %v96 = vmul.f32 %v95, %v65
  %v97 = vmul.f32 %v66, %v66
  %v98 = vsub.f32 %v96, %v97
  %v99 = vmax.f32 %v98, 0.0
  %v100 = vsub.f32 %v35, %v66
  %v101 = vsub.f32 %v36, %v66
  %v102 = vsub.f32 %v37, %v66
  %v103 = vsub.f32 %v38, %v66
  %v104 = vsub.f32 %v39, %v66
  %v105 = vsub.f32 %v40, %v66
  %v106 = vsub.f32 %v41, %v66
  %v107 = vsub.f32 %v42, %v66
  %v108 = vadd.f32 %v99, 1e-05
  %v109 = vrsqrt.pop %v108
  %v110 = vmul.f32 %v100, %v109
  %v111 = vmul.f32 %v101, %v109
  %v112 = vmul.f32 %v102, %v109
  %v113 = vmul.f32 %v103, %v109
  %v114 = vmul.f32 %v104, %v109
  %v115 = vmul.f32 %v105, %v109
  %v116 = vmul.f32 %v106, %v109
  %v117 = vmul.f32 %v107, %v109
  %v118 = vpack.c.bf16 %v111, %v110
  %v119 = vpack.c.bf16 %v113, %v112
  %v120 = vpack.c.bf16 %v115, %v114
  %v121 = vpack.c.bf16 %v117, %v116
  %v122 = vld [vmem:[%s2] sm:$0xf]
  %v123 = vld [vmem:[%s2 + $0x4] sm:$0xf]
  %v124 = vld [vmem:[%s2 + $0x8] sm:$0xf]
  %v125 = vld [vmem:[%s2 + $0xc] sm:$0xf]
  %v126 = vld [vmem:[%s2 + $0x10] sm:$0x1]
  %v127 = vld [vmem:[%s3] sm:$0x1]
  %v129 = vlaneseq
  %v130 = vshrl.u32 %v129, 7
  %v131 = vsub.s32 0, %v130
  %v132 = vrot.slane %v127, %v131
  %v139 = vunpack.c.l.b16 %v122
  %v140 = vunpack.c.l.b16 %v123
  %v141 = vunpack.c.l.b16 %v124
  %v142 = vunpack.c.l.b16 %v125
  %v143 = vunpack.c.l.b16 %v126
  %v144 = vpack.c.b16 %v140, %v139
  %v145 = vpack.c.b16 %v142, %v141
  %v146 = vpack.c.b16 %v143, %v143
  %v150 = vsel %vm43, %v118, 0
  %v153 = vsel %vm43, %v119, 0
  %v156 = vsel %vm43, %v120, 0
  %v159 = vsel %vm43, %v121, 0
  %vm161 = vcmask 1040384
  %v162 = vsel 0, 4294967295, 65535
  %v163 = vsel %vm161, %v162, 0
  %v165 = vand.u32 %v146, %v163
  %167 = vmatprep.subr.bf16.mxu0 0
  %168 = vmatpush1.bf16.msra.mxu0 0
  %169 = vmatprep.subr.bf16.mxu0 0
  %170 = vmatpush1.bf16.msra.mxu0 0
  %171 = vmatprep.subr.bf16.mxu0 0
  %172 = vmatpush1.bf16.msra.mxu0 0
  %173 = vmatprep.subr.bf16.mxu0 0
  %174 = vmatpush1.bf16.msra.mxu0 0
  %175 = vmatprep.subr.bf16.mxu0 0
  %176 = vmatpush1.bf16.msra.mxu0 0
  %177 = vmatprep.subr.bf16.mxu0 0
  %178 = vmatpush1.bf16.msra.mxu0 %v165
  %179 = vmatprep.subr.bf16.mxu0 0
  %180 = vmatpush1.bf16.msra.mxu0 %v145
  %181 = vmatprep.subr.bf16.mxu0 0
  %182 = vmatpush1.bf16.msra.mxu0 %v144
  %183 = vmatprep.subr.bf16.mxu0 0
  %184 = vmatpush2.bf16.msra.mxu0 0
  %185 = vmatprep.subr.bf16.mxu0 0
  %186 = vmatpush2.bf16.msra.mxu0 0
  %187 = vmatprep.subr.bf16.mxu0 0
  %188 = vmatpush2.bf16.msra.mxu0 0
  %189 = vmatprep.subr.bf16.mxu0 0
  %190 = vmatpush2.bf16.msra.mxu0 0
  %191 = vmatprep.subr.bf16.mxu0 0
  %192 = vmatpush2.bf16.msra.mxu0 0
  %193 = vmatprep.subr.bf16.mxu0 0
  %194 = vmatpush2.bf16.msra.mxu0 0
  %195 = vmatprep.subr.bf16.mxu0 0
  %196 = vmatpush2.bf16.msra.mxu0 0
  %197 = vmatprep.subr.bf16.mxu0 0
  %198 = vmatpush2.bf16.msra.mxu0 0
  %199 = vmatprep.mubr.bf16.mxu0 0
  %200 = vmatmul.mubr.bf16.gmra.mxu0 %v150
  %v201 = vpop.f32.mrf.mxu0
  %v202 = vadd.f32 %v132, %v201
  %v203 = vpop.f32.mrf.mxu0
  %v204 = vpop.f32.mrf.mxu0
  %v205 = vadd.f32 %v132, %v204
  %v206 = vpop.f32.mrf.mxu0
  %207 = vmatprep.mubr.bf16.mxu0 0
  %208 = vmatmul.mubr.bf16.gmra.mxu0 %v153
  %v209 = vpop.f32.mrf.mxu0
  %v210 = vadd.f32 %v132, %v209
  %v211 = vpop.f32.mrf.mxu0
  %v212 = vpop.f32.mrf.mxu0
  %v213 = vadd.f32 %v132, %v212
  %v214 = vpop.f32.mrf.mxu0
  %215 = vmatprep.mubr.bf16.mxu0 0
  %216 = vmatmul.mubr.bf16.gmra.mxu0 %v156
  %v217 = vpop.f32.mrf.mxu0
  %v218 = vadd.f32 %v132, %v217
  %v219 = vpop.f32.mrf.mxu0
  %v220 = vpop.f32.mrf.mxu0
  %v221 = vadd.f32 %v132, %v220
  %v222 = vpop.f32.mrf.mxu0
  %223 = vmatprep.mubr.bf16.mxu0 0
  %224 = vmatmul.mubr.bf16.gmra.mxu0 %v159
  %v225 = vpop.f32.mrf.mxu0
  %v226 = vadd.f32 %v132, %v225
  %v227 = vpop.f32.mrf.mxu0
  %v228 = vpop.f32.mrf.mxu0
  %v229 = vadd.f32 %v132, %v228
  %v230 = vpop.f32.mrf.mxu0
  %231 = vdwg.mxu0
  %v232 = vmax.f32 %v202, 0.0
  %v233 = vmax.f32 %v205, 0.0
  %v234 = vmax.f32 %v210, 0.0
  %v235 = vmax.f32 %v213, 0.0
  %v236 = vmax.f32 %v218, 0.0
  %v237 = vmax.f32 %v221, 0.0
  %v238 = vmax.f32 %v226, 0.0
  %v239 = vmax.f32 %v229, 0.0
  %v240 = vld [vmem:[%s1] sm:$0xff]
  %v241 = vld [vmem:[%s1 + $0x8] sm:$0xff]
  %v242 = vld [vmem:[%s1 + $0x10] sm:$0xff]
  %v243 = vld [vmem:[%s1 + $0x18] sm:$0xff]
  %v244 = vld [vmem:[%s1 + $0x20] sm:$0xff]
  %v245 = vld [vmem:[%s1 + $0x28] sm:$0xff]
  %v246 = vld [vmem:[%s1 + $0x30] sm:$0xff]
  %v247 = vld [vmem:[%s1 + $0x38] sm:$0xff]
  %v248 = vpack.c.bf16 %v241, %v240
  %v249 = vpack.c.bf16 %v243, %v242
  %v250 = vpack.c.bf16 %v245, %v244
  %v251 = vpack.c.bf16 %v247, %v246
  %v252 = vpack.c.bf16 %v233, %v232
  %v253 = vpack.c.bf16 %v235, %v234
  %v254 = vpack.c.bf16 %v237, %v236
  %v255 = vpack.c.bf16 %v239, %v238
  %v256 = vld [vmem:[%s4] sm:$0xf]
  %v257 = vld [vmem:[%s4 + $0x4] sm:$0xf]
  %v258 = vld [vmem:[%s4 + $0x8] sm:$0xf]
  %v259 = vld [vmem:[%s4 + $0xc] sm:$0xf]
  %v260 = vld [vmem:[%s4 + $0x10] sm:$0xf]
  %v261 = vld [vmem:[%s4 + $0x14] sm:$0xf]
  %v262 = vld [vmem:[%s4 + $0x18] sm:$0xf]
  %v263 = vld [vmem:[%s4 + $0x1c] sm:$0xf]
  %v264 = vld [vmem:[%s4 + $0x20] sm:$0xf]
  %v265 = vld [vmem:[%s4 + $0x24] sm:$0xf]
  %v266 = vld [vmem:[%s4 + $0x28] sm:$0xf]
  %v267 = vld [vmem:[%s4 + $0x2c] sm:$0xf]
  %v268 = vld [vmem:[%s4 + $0x30] sm:$0xf]
  %v269 = vld [vmem:[%s4 + $0x34] sm:$0xf]
  %v270 = vld [vmem:[%s4 + $0x38] sm:$0xf]
  %v271 = vld [vmem:[%s4 + $0x3c] sm:$0xf]
  %v272 = vld [vmem:[%s5] sm:$0x3]
  %vm273 = vcmask 31744
  %v275 = vsel %vm273, %v248, 0
  %v278 = vsel %vm273, %v249, 0
  %v281 = vsel %vm273, %v250, 0
  %v284 = vsel %vm273, %v251, 0
  %vm286 = vcmask 1041408
  %v288 = vsel %vm286, %v272, 0
  %290 = vmatprep.subr.bf16.mxu0 0
  %291 = vmatpush1.bf16.msra.mxu0 0
  %292 = vmatprep.subr.bf16.mxu0 0
  %293 = vmatpush1.bf16.msra.mxu0 0
  %294 = vmatprep.subr.bf16.mxu0 0
  %295 = vmatpush1.bf16.msra.mxu0 0
  %296 = vmatprep.subr.bf16.mxu0 0
  %297 = vmatpush1.bf16.msra.mxu0 0
  %298 = vmatprep.subr.bf16.mxu0 0
  %299 = vmatpush1.bf16.msra.mxu0 0
  %300 = vmatprep.subr.bf16.mxu0 0
  %301 = vmatpush1.bf16.msra.mxu0 0
  %302 = vmatprep.subr.bf16.mxu0 0
  %303 = vmatpush1.bf16.msra.mxu0 0
  %304 = vmatprep.subr.bf16.mxu0 0
  %305 = vmatpush1.bf16.msra.mxu0 %v288
  %306 = vmatprep.subr.bf16.mxu0 0
  %307 = vmatpush2.bf16.msra.mxu0 0
  %308 = vmatprep.subr.bf16.mxu0 0
  %309 = vmatpush2.bf16.msra.mxu0 0
  %310 = vmatprep.subr.bf16.mxu0 0
  %311 = vmatpush2.bf16.msra.mxu0 0
  %312 = vmatprep.subr.bf16.mxu0 0
  %313 = vmatpush2.bf16.msra.mxu0 0
  %314 = vmatprep.subr.bf16.mxu0 0
  %315 = vmatpush2.bf16.msra.mxu0 0
  %316 = vmatprep.subr.bf16.mxu0 0
  %317 = vmatpush2.bf16.msra.mxu0 0
  %318 = vmatprep.subr.bf16.mxu0 0
  %319 = vmatpush2.bf16.msra.mxu0 0
  %320 = vmatprep.subr.bf16.mxu0 0
  %321 = vmatpush2.bf16.msra.mxu0 0
  %322 = vmatprep.mubr.bf16.mxu0 0
  %323 = vmatmul.mubr.bf16.gmra.mxu0 %v275
  %v324 = vpop.f32.mrf.mxu0
  %v325 = vadd.f32 0.0, %v324
  %v326 = vpop.f32.mrf.mxu0
  %v327 = vpop.f32.mrf.mxu0
  %v328 = vadd.f32 0.0, %v327
  %v329 = vpop.f32.mrf.mxu0
  %330 = vmatprep.mubr.bf16.mxu0 0
  %331 = vmatmul.mubr.bf16.gmra.mxu0 %v278
  %v332 = vpop.f32.mrf.mxu0
  %v333 = vadd.f32 0.0, %v332
  %v334 = vpop.f32.mrf.mxu0
  %v335 = vpop.f32.mrf.mxu0
  %v336 = vadd.f32 0.0, %v335
  %v337 = vpop.f32.mrf.mxu0
  %338 = vmatprep.mubr.bf16.mxu0 0
  %339 = vmatmul.mubr.bf16.gmra.mxu0 %v281
  %v340 = vpop.f32.mrf.mxu0
  %v341 = vadd.f32 0.0, %v340
  %v342 = vpop.f32.mrf.mxu0
  %v343 = vpop.f32.mrf.mxu0
  %v344 = vadd.f32 0.0, %v343
  %v345 = vpop.f32.mrf.mxu0
  %346 = vmatprep.mubr.bf16.mxu0 0
  %347 = vmatmul.mubr.bf16.gmra.mxu0 %v284
  %v348 = vpop.f32.mrf.mxu0
  %v349 = vadd.f32 0.0, %v348
  %v350 = vpop.f32.mrf.mxu0
  %v351 = vpop.f32.mrf.mxu0
  %v352 = vadd.f32 0.0, %v351
  %v353 = vpop.f32.mrf.mxu0
  %354 = vdwg.mxu0
  %v371 = vunpack.c.l.b16 %v256
  %v372 = vunpack.c.l.b16 %v257
  %v373 = vunpack.c.l.b16 %v258
  %v374 = vunpack.c.l.b16 %v259
  %v375 = vunpack.c.l.b16 %v260
  %v376 = vunpack.c.l.b16 %v261
  %v377 = vunpack.c.l.b16 %v262
  %v378 = vunpack.c.l.b16 %v263
  %v379 = vunpack.c.l.b16 %v264
  %v380 = vunpack.c.l.b16 %v265
  %v381 = vunpack.c.l.b16 %v266
  %v382 = vunpack.c.l.b16 %v267
  %v383 = vunpack.c.l.b16 %v268
  %v384 = vunpack.c.l.b16 %v269
  %v385 = vunpack.c.l.b16 %v270
  %v386 = vunpack.c.l.b16 %v271
  %v387 = vpack.c.b16 %v372, %v371
  %v388 = vpack.c.b16 %v374, %v373
  %v389 = vpack.c.b16 %v376, %v375
  %v390 = vpack.c.b16 %v378, %v377
  %v391 = vpack.c.b16 %v380, %v379
  %v392 = vpack.c.b16 %v382, %v381
  %v393 = vpack.c.b16 %v384, %v383
  %v394 = vpack.c.b16 %v386, %v385
  %403 = vmatprep.subr.bf16.mxu0 0
  %404 = vmatpush1.bf16.msra.mxu0 %v394
  %405 = vmatprep.subr.bf16.mxu0 0
  %406 = vmatpush1.bf16.msra.mxu0 %v393
  %407 = vmatprep.subr.bf16.mxu0 0
  %408 = vmatpush1.bf16.msra.mxu0 %v392
  %409 = vmatprep.subr.bf16.mxu0 0
  %410 = vmatpush1.bf16.msra.mxu0 %v391
  %411 = vmatprep.subr.bf16.mxu0 0
  %412 = vmatpush1.bf16.msra.mxu0 %v390
  %413 = vmatprep.subr.bf16.mxu0 0
  %414 = vmatpush1.bf16.msra.mxu0 %v389
  %415 = vmatprep.subr.bf16.mxu0 0
  %416 = vmatpush1.bf16.msra.mxu0 %v388
  %417 = vmatprep.subr.bf16.mxu0 0
  %418 = vmatpush1.bf16.msra.mxu0 %v387
  %419 = vmatprep.subr.bf16.mxu0 0
  %420 = vmatpush2.bf16.msra.mxu0 0
  %421 = vmatprep.subr.bf16.mxu0 0
  %422 = vmatpush2.bf16.msra.mxu0 0
  %423 = vmatprep.subr.bf16.mxu0 0
  %424 = vmatpush2.bf16.msra.mxu0 0
  %425 = vmatprep.subr.bf16.mxu0 0
  %426 = vmatpush2.bf16.msra.mxu0 0
  %427 = vmatprep.subr.bf16.mxu0 0
  %428 = vmatpush2.bf16.msra.mxu0 0
  %429 = vmatprep.subr.bf16.mxu0 0
  %430 = vmatpush2.bf16.msra.mxu0 0
  %431 = vmatprep.subr.bf16.mxu0 0
  %432 = vmatpush2.bf16.msra.mxu0 0
  %433 = vmatprep.subr.bf16.mxu0 0
  %434 = vmatpush2.bf16.msra.mxu0 0
  %435 = vmatprep.mubr.bf16.mxu0 0
  %436 = vmatmul.mubr.bf16.gmra.mxu0 %v252
  %v437 = vpop.f32.mrf.mxu0
  %v438 = vadd.f32 %v325, %v437
  %v439 = vpop.f32.mrf.mxu0
  %v440 = vpop.f32.mrf.mxu0
  %v441 = vadd.f32 %v328, %v440
  %v442 = vpop.f32.mrf.mxu0
  %443 = vmatprep.mubr.bf16.mxu0 0
  %444 = vmatmul.mubr.bf16.gmra.mxu0 %v253
  %v445 = vpop.f32.mrf.mxu0
  %v446 = vadd.f32 %v333, %v445
  %v447 = vpop.f32.mrf.mxu0
  %v448 = vpop.f32.mrf.mxu0
  %v449 = vadd.f32 %v336, %v448
  %v450 = vpop.f32.mrf.mxu0
  %451 = vmatprep.mubr.bf16.mxu0 0
  %452 = vmatmul.mubr.bf16.gmra.mxu0 %v254
  %v453 = vpop.f32.mrf.mxu0
  %v454 = vadd.f32 %v341, %v453
  %v455 = vpop.f32.mrf.mxu0
  %v456 = vpop.f32.mrf.mxu0
  %v457 = vadd.f32 %v344, %v456
  %v458 = vpop.f32.mrf.mxu0
  %459 = vmatprep.mubr.bf16.mxu0 0
  %460 = vmatmul.mubr.bf16.gmra.mxu0 %v255
  %v461 = vpop.f32.mrf.mxu0
  %v462 = vadd.f32 %v349, %v461
  %v463 = vpop.f32.mrf.mxu0
  %v464 = vpop.f32.mrf.mxu0
  %v465 = vadd.f32 %v352, %v464
  %v466 = vpop.f32.mrf.mxu0
  %467 = vdwg.mxu0
  %v468 = vld [vmem:[%s6] sm:$0x1]
  %v470 = vlaneseq
  %v471 = vshrl.u32 %v470, 7
  %v472 = vsub.s32 0, %v471
  %v473 = vrot.slane %v468, %v472
  %v475 = vadd.f32 %v438, %v473
  %v476 = vadd.f32 %v441, %v473
  %v477 = vadd.f32 %v446, %v473
  %v478 = vadd.f32 %v449, %v473
  %v479 = vadd.f32 %v454, %v473
  %v480 = vadd.f32 %v457, %v473
  %v481 = vadd.f32 %v462, %v473
  %v482 = vadd.f32 %v465, %v473
  %v483 = vmax.f32 %v475, 0.0
  %v484 = vmax.f32 %v476, 0.0
  %v485 = vmax.f32 %v477, 0.0
  %v486 = vmax.f32 %v478, 0.0
  %v487 = vmax.f32 %v479, 0.0
  %v488 = vmax.f32 %v480, 0.0
  %v489 = vmax.f32 %v481, 0.0
  %v490 = vmax.f32 %v482, 0.0
  %v491 = vld [vmem:[%s7] sm:$0x1]
  %v493 = vlaneseq
  %v494 = vshrl.u32 %v493, 7
  %v495 = vsub.s32 0, %v494
  %v496 = vrot.slane %v491, %v495
  %v498 = vmul.f32 %v483, %v496
  %v499 = vmul.f32 %v484, %v496
  %v500 = vmul.f32 %v485, %v496
  %v501 = vmul.f32 %v486, %v496
  %v502 = vmul.f32 %v487, %v496
  %v503 = vmul.f32 %v488, %v496
  %v504 = vmul.f32 %v489, %v496
  %v505 = vmul.f32 %v490, %v496
  %506 = vadd.xlane.f32.xlu0 %v498
  %v507 = vpop.xlane.xlu0 %506
  %508 = vadd.xlane.f32.xlu0 %v499
  %v509 = vpop.xlane.xlu0 %508
  %510 = vadd.xlane.f32.xlu0 %v500
  %v511 = vpop.xlane.xlu0 %510
  %512 = vadd.xlane.f32.xlu0 %v501
  %v513 = vpop.xlane.xlu0 %512
  %514 = vadd.xlane.f32.xlu0 %v502
  %v515 = vpop.xlane.xlu0 %514
  %516 = vadd.xlane.f32.xlu0 %v503
  %v517 = vpop.xlane.xlu0 %516
  %518 = vadd.xlane.f32.xlu0 %v504
  %v519 = vpop.xlane.xlu0 %518
  %520 = vadd.xlane.f32.xlu0 %v505
  %v521 = vpop.xlane.xlu0 %520
  %v522 = vstv %s34
  %v523 = vadd.f32 %v507, %v522
  %v524 = vadd.f32 %v509, %v522
  %v525 = vadd.f32 %v511, %v522
  %v526 = vadd.f32 %v513, %v522
  %v527 = vadd.f32 %v515, %v522
  %v528 = vadd.f32 %v517, %v522
  %v529 = vadd.f32 %v519, %v522
  %v530 = vadd.f32 %v521, %v522
  %vm531 = vcmask 7168
  %532 = vst.msk [vmem:[%s9] sm:$0xff] %vm531, %v523
  %533 = vst.msk [vmem:[%s9 + $0x8] sm:$0xff] %vm531, %v524
  %534 = vst.msk [vmem:[%s9 + $0x10] sm:$0xff] %vm531, %v525
  %535 = vst.msk [vmem:[%s9 + $0x18] sm:$0xff] %vm531, %v526
  %536 = vst.msk [vmem:[%s9 + $0x20] sm:$0xff] %vm531, %v527
  %537 = vst.msk [vmem:[%s9 + $0x28] sm:$0xff] %vm531, %v528
  %538 = vst.msk [vmem:[%s9 + $0x30] sm:$0xff] %vm531, %v529
  %539 = vst.msk [vmem:[%s9 + $0x38] sm:$0xff] %vm531, %v530
  // Predicated region
  $region38: #{tpu_custom_call.1} parent=0 // pred_check
    _
  $region39: #{tpu_custom_call.1} parent=0 // pred_check_branch
    %541 = sbr.rel (0) target = $region41
  $region40: #{tpu_custom_call.1} parent=0 // pred_region
    _
  $region41: #{tpu_custom_call.1} parent=0 // pred_fallthru
    _
  // Predicated region
  $region42: #{tpu_custom_call.1} parent=0 // pred_check
    _
  $region43: #{tpu_custom_call.1} parent=0 // pred_check_branch
    %543 = sbr.rel (0) target = $region45
  $region44: #{tpu_custom_call.1} parent=0 // pred_region
    _
  $region45: #{tpu_custom_call.1} parent=0 // pred_fallthru
    _

</llo_original>
